<compile_context>
chip_gen: v6e
topology: v6e:2x2x1
jax: 0.10.0
libtpu: 0.0.40
codegen_flags: <defaults>
</compile_context>

<pallas_src>
import functools
import math

import jax
import jax.numpy as jnp
from jax.experimental import pallas as pl
from jax.experimental.pallas import tpu as pltpu

# Sublane-aligned offset of the "real" channel rows inside the zero-padded
# conv scratch (>= any realistic k//2, keeps the scratch store 8-aligned).
_PAD_OFF = 8

# Conservative per-core VMEM budget for choosing the tiling scheme. v5e/v6e
# have 128 MiB per TensorCore, v7x only 64 MiB, so stay well below that.
_VMEM_BUDGET = 48 * 1024 * 1024


def eca_kernel_size(channels, gamma=2, b=1):
    k = int(abs(math.log(channels, 2) + b) / gamma)
    return k if k % 2 else k + 1


def _vmem_limit(needed_bytes):
    # Explicit scoped-VMEM limit: at least the old default, at most ~60 MiB.
    return int(min(max(needed_bytes + (4 << 20), 16 << 20), 60 << 20))


def _channel_conv_sigmoid(pooled, w_ref, k, pad_ref):
    """sigmoid(Conv1d(1, 1, k, padding=k//2, bias=False)) over channels.

    Implemented as k shifted adds over a zero-padded VMEM scratch (no MXU and
    no (C, C) banded matrix):
        out[i] = sigmoid(sum_t w[t] * pooled[i + t - k//2])   (zero padded)
    which matches PyTorch Conv1d cross-correlation semantics exactly.

    pooled:  (C, 1) float32 channel means (channels on the sublane axis).
    w_ref:   (k,)   float32 conv taps in SMEM.
    pad_ref: (C + 2 * _PAD_OFF, 1) float32 VMEM scratch.
    """
    C = pooled.shape[0]
    pad = k // 2
    pad_ref[...] = jnp.zeros_like(pad_ref)           # zero padding at the edges
    pad_ref[_PAD_OFF:_PAD_OFF + C, :] = pooled       # 8-aligned sublane store
    off0 = _PAD_OFF - pad
    logits = w_ref[0] * pad_ref[off0:off0 + C, :]
    for t in range(1, k):
        logits = logits + w_ref[t] * pad_ref[off0 + t:off0 + t + C, :]
    return jax.nn.sigmoid(logits)                    # exp on the EUP slot


# ----------------------------------------------------------------------------
# Fused single-pass path: one (C, H*W) block per batch element.
# ----------------------------------------------------------------------------
def _eca_fused_kernel(x_ref, w_ref, o_ref, pad_ref, *, k):
    # x_ref/o_ref: (C, HW) (leading batch dim squeezed), w_ref: (k,) in SMEM.
    x = x_ref[...]
    # AdaptiveAvgPool2d(1) == mean over the flattened spatial (lane) axis.
    pooled = jnp.mean(x.astype(jnp.float32), axis=1, keepdims=True)   # (C, 1)
    atten = _channel_conv_sigmoid(pooled, w_ref, k, pad_ref)          # (C, 1)
    o_ref[...] = (x * atten.astype(x.dtype)).astype(o_ref.dtype)


def _eca_fused(x2, conv_w):
    B, C, HW = x2.shape
    k = conv_w.shape[0]
    itemsize = x2.dtype.itemsize
    # 2 double-buffered input blocks + 2 output blocks + small conv scratch.
    needed = 4 * C * HW * itemsize + 4 * (C + 2 * _PAD_OFF) * 128 * 4
    return pl.pallas_call(
        functools.partial(_eca_fused_kernel, k=k),
        out_shape=jax.ShapeDtypeStruct((B, C, HW), x2.dtype),
        grid=(B,),
        in_specs=[
            pl.BlockSpec((pl.Squeezed(), C, HW), lambda b: (b, 0, 0)),
            pl.BlockSpec(memory_space=pltpu.MemorySpace.SMEM),
        ],
        out_specs=pl.BlockSpec((pl.Squeezed(), C, HW), lambda b: (b, 0, 0)),
        scratch_shapes=[pltpu.VMEM((C + 2 * _PAD_OFF, 1), jnp.float32)],
        compiler_params=pltpu.CompilerParams(
            dimension_semantics=("parallel",),
            vmem_limit_bytes=_vmem_limit(needed)),
    )(x2, conv_w)


# ----------------------------------------------------------------------------
# Tiled two-pass fallback for feature maps too large for one block per batch.
# ----------------------------------------------------------------------------
def _eca_pool_kernel(x_ref, w_ref, atten_ref, sum_ref, pad_ref, *, k, inv_hw):
    h = pl.program_id(1)

    @pl.when(h == 0)
    def _init():
        sum_ref[...] = jnp.zeros_like(sum_ref)

    sum_ref[...] += jnp.sum(x_ref[...].astype(jnp.float32), axis=1,
                            keepdims=True)

    @pl.when(h == pl.num_programs(1) - 1)
    def _finalize():
        pooled = sum_ref[...] * inv_hw
        atten_ref[...] = _channel_conv_sigmoid(pooled, w_ref, k, pad_ref)


def _eca_scale_kernel(x_ref, atten_ref, o_ref):
    x = x_ref[...]
    o_ref[...] = (x * atten_ref[...].astype(x.dtype)).astype(o_ref.dtype)


def _eca_tiled(x2, conv_w, thw):
    B, C, HW = x2.shape
    k = conv_w.shape[0]
    itemsize = x2.dtype.itemsize
    n_hw = HW // thw

    # Pass 1: per-channel spatial sum accumulated over HW tiles, then the
    # channel conv + sigmoid -> attention of shape (B, C, 1) in f32.
    pool_needed = 2 * C * thw * itemsize + 16 * (C + 2 * _PAD_OFF) * 4
    atten = pl.pallas_call(
        functools.partial(_eca_pool_kernel, k=k, inv_hw=1.0 / HW),
        out_shape=jax.ShapeDtypeStruct((B, C, 1), jnp.float32),
        grid=(B, n_hw),
        in_specs=[
            pl.BlockSpec((pl.Squeezed(), C, thw), lambda b, h: (b, 0, h)),
            pl.BlockSpec(memory_space=pltpu.MemorySpace.SMEM),
        ],
        out_specs=pl.BlockSpec((pl.Squeezed(), C, 1), lambda b, h: (b, 0, 0)),
        scratch_shapes=[
            pltpu.VMEM((C, 1), jnp.float32),
            pltpu.VMEM((C + 2 * _PAD_OFF, 1), jnp.float32),
        ],
        compiler_params=pltpu.CompilerParams(
            dimension_semantics=("parallel", "arbitrary"),
            vmem_limit_bytes=_vmem_limit(pool_needed)),
    )(x2, conv_w)

    # Pass 2: broadcast multiply, fully parallel grid, lane-dense thw tiles.
    scale_needed = 4 * C * thw * itemsize + 4 * C * 4
    out = pl.pallas_call(
        _eca_scale_kernel,
        out_shape=jax.ShapeDtypeStruct((B, C, HW), x2.dtype),
        grid=(B, n_hw),
        in_specs=[
            pl.BlockSpec((pl.Squeezed(), C, thw), lambda b, h: (b, 0, h)),
            pl.BlockSpec((pl.Squeezed(), C, 1), lambda b, h: (b, 0, 0)),
        ],
        out_specs=pl.BlockSpec((pl.Squeezed(), C, thw), lambda b, h: (b, 0, h)),
        compiler_params=pltpu.CompilerParams(
            dimension_semantics=("parallel", "parallel"),
            vmem_limit_bytes=_vmem_limit(scale_needed)),
    )(x2, atten)
    return out


def _largest_tile(total, limit, multiple):
    """Largest divisor of `total` that is a multiple of `multiple` and <= limit."""
    cap = min(total, max(limit, multiple))
    t = (cap // multiple) * multiple
    while t >= multiple:
        if total % t == 0:
            return t
        t -= multiple
    return None


def eca_forward(x, conv_w, *, force_tiled=False, max_tile_hw=None):
    """ECA forward. x: (B, C, H, W); conv_w: (k,) Conv1d(1,1,k,bias=False) weight."""
    B, C, H, W = x.shape
    HW = H * W
    x2 = x.reshape(B, C, HW)
    itemsize = x2.dtype.itemsize

    # TODO(synk): for tiny feature maps (H*W < 128) the stores are masked
    # (not lane-dense); padding HW up to 128 with a fused pad would fix that.

    fused_bytes = 4 * C * HW * itemsize
    if not force_tiled and fused_bytes <= _VMEM_BUDGET:
        out = _eca_fused(x2, conv_w)
    else:
        thw_limit = max((_VMEM_BUDGET - (4 << 20)) // (4 * C * itemsize), 128)
        if max_tile_hw is not None:
            thw_limit = min(thw_limit, max_tile_hw)
        thw = _largest_tile(HW, thw_limit, 128)
        if thw is None:
            # TODO(synk): H*W has no 128-multiple divisor fitting the budget;
            # a masked remainder tile would be needed. Use one block per batch.
            out = _eca_fused(x2, conv_w)
        else:
            out = _eca_tiled(x2, conv_w, thw)
    return out.reshape(B, C, H, W)


def _reference(x, conv_w):
    # Pure-JAX reference of the PyTorch forward for validation.
    B, C, H, W = x.shape
    k = conv_w.shape[0]
    pad = k // 2
    pooled = jnp.mean(x.astype(jnp.float32), axis=(2, 3))      # (B, C)
    pooled_p = jnp.pad(pooled, ((0, 0), (pad, pad)))           # zero padding
    conv = jnp.zeros_like(pooled)
    for t in range(k):
        conv = conv + conv_w[t] * pooled_p[:, t:t + C]
    atten = jax.nn.sigmoid(conv)[:, :, None, None]             # (B, C, 1, 1)
    return (atten * x).astype(x.dtype)


if __name__ == "__main__":
    B, C, H, W = 2, 16, 16, 16
    k = eca_kernel_size(C)                 # = 3 for C = 16

    key = jax.random.PRNGKey(0)
    kx, kw = jax.random.split(key)
    x = jax.random.normal(kx, (B, C, H, W), dtype=jnp.float32)
    # Deterministic conv1d weight (PyTorch shape (1, 1, k) -> flattened (k,)).
    conv_w = jax.random.normal(kw, (k,), dtype=jnp.float32) * 0.5

    ref = _reference(x, conv_w)

    # Fused single-pass path.
    out = jax.block_until_ready(eca_forward(x, conv_w))
    assert out.shape == (B, C, H, W)
    assert jnp.allclose(out, ref, atol=1e-5, rtol=1e-5), "fused path mismatch"

    # Tiled two-pass fallback path (forced, 2 HW tiles) to validate it too.
    out_tiled = jax.block_until_ready(
        eca_forward(x, conv_w, force_tiled=True, max_tile_hw=128))
    assert jnp.allclose(out_tiled, ref, atol=1e-5, rtol=1e-5), "tiled path mismatch"

    print("KERNEL_OK")
</pallas_src>

<mosaic_0001>
module attributes {stable_mosaic.version = 11 : i64} {
  func.func @_eca_fused_kernel(%arg0: i32, %arg1: memref<1x16x256xf32, #tpu.memory_space<vmem>>, %arg2: memref<3xf32, #tpu.memory_space<smem>>, %arg3: memref<1x16x256xf32, #tpu.memory_space<vmem>>, %arg4: memref<32x1xf32, #tpu.memory_space<vmem>>) attributes {dimension_semantics = [#tpu.dimension_semantics<parallel>], iteration_bounds = array<i64: 2>, scalar_prefetch = 0 : i64, scratch_operands = 1 : i64, tpu.core_type = #tpu.core_type<tc>, window_params = [{transform_indices = @transform_0, window_bounds = array<i64: 1, 16, 256>}, {transform_indices = @transform_1, window_bounds = array<i64: 3>}, {transform_indices = @transform_2, window_bounds = array<i64: 1, 16, 256>}]} {
    %c0 = arith.constant 0 : index
    %c0_0 = arith.constant 0 : index
    %c0_1 = arith.constant 0 : index
    %0 = vector.load %arg1[%c0, %c0_0, %c0_1] : memref<1x16x256xf32, #tpu.memory_space<vmem>>, vector<1x16x256xf32>
    %1 = vector.shape_cast %0 : vector<1x16x256xf32> to vector<16x256xf32>
    %cst = arith.constant dense<0.000000e+00> : vector<16xf32>
    %2 = vector.multi_reduction <add>, %1, %cst [1] : vector<16x256xf32> to vector<16xf32>
    %3 = vector.shape_cast %2 : vector<16xf32> to vector<16x1xf32>
    %cst_2 = arith.constant 2.560000e+02 : f32
    %4 = vector.broadcast %cst_2 : f32 to vector<16x1xf32>
    %5 = arith.divf %3, %4 : vector<16x1xf32>
    %cst_3 = arith.constant 0.000000e+00 : f32
    %6 = vector.broadcast %cst_3 : f32 to vector<32x1xf32>
    %c0_4 = arith.constant 0 : index
    %c0_5 = arith.constant 0 : index
    %7 = vector.load %arg4[%c0_4, %c0_5] : memref<32x1xf32, #tpu.memory_space<vmem>>, vector<32x1xf32>
    tpu.vector_store %arg4[%c0_4, %c0_5], %6 {strides = array<i32>} : memref<32x1xf32, #tpu.memory_space<vmem>>, vector<32x1xf32>,
    %c8 = arith.constant 8 : index
    %c0_6 = arith.constant 0 : index
    %8 = vector.load %arg4[%c8, %c0_6] : memref<32x1xf32, #tpu.memory_space<vmem>>, vector<16x1xf32>
    tpu.vector_store %arg4[%c8, %c0_6], %5 {strides = array<i32>} : memref<32x1xf32, #tpu.memory_space<vmem>>, vector<16x1xf32>,
    %c0_7 = arith.constant 0 : index
    %9 = memref.load %arg2[%c0_7] : memref<3xf32, #tpu.memory_space<smem>>
    %c7 = arith.constant 7 : index
    %c0_8 = arith.constant 0 : index
    %10 = vector.load %arg4[%c7, %c0_8] : memref<32x1xf32, #tpu.memory_space<vmem>>, vector<16x1xf32>
    %11 = vector.broadcast %9 : f32 to vector<16x1xf32>
    %12 = arith.mulf %11, %10 : vector<16x1xf32>
    %c1 = arith.constant 1 : index
    %13 = memref.load %arg2[%c1] : memref<3xf32, #tpu.memory_space<smem>>
    %c8_9 = arith.constant 8 : index
    %c0_10 = arith.constant 0 : index
    %14 = vector.load %arg4[%c8_9, %c0_10] : memref<32x1xf32, #tpu.memory_space<vmem>>, vector<16x1xf32>
    %15 = vector.broadcast %13 : f32 to vector<16x1xf32>
    %16 = arith.mulf %15, %14 : vector<16x1xf32>
    %17 = arith.addf %12, %16 : vector<16x1xf32>
    %c2 = arith.constant 2 : index
    %18 = memref.load %arg2[%c2] : memref<3xf32, #tpu.memory_space<smem>>
    %c9 = arith.constant 9 : index
    %c0_11 = arith.constant 0 : index
    %19 = vector.load %arg4[%c9, %c0_11] : memref<32x1xf32, #tpu.memory_space<vmem>>, vector<16x1xf32>
    %20 = vector.broadcast %18 : f32 to vector<16x1xf32>
    %21 = arith.mulf %20, %19 : vector<16x1xf32>
    %22 = arith.addf %17, %21 : vector<16x1xf32>
    %23 = arith.negf %22 : vector<16x1xf32>
    %24 = math.exp %23 : vector<16x1xf32>
    %cst_12 = arith.constant 1.000000e+00 : f32
    %25 = vector.broadcast %cst_12 : f32 to vector<16x1xf32>
    %26 = arith.addf %25, %24 : vector<16x1xf32>
    %27 = arith.divf %25, %26 : vector<16x1xf32>
    %28 = vector.broadcast %27 : vector<16x1xf32> to vector<16x256xf32>
    %29 = arith.mulf %1, %28 : vector<16x256xf32>
    %c0_13 = arith.constant 0 : index
    %c0_14 = arith.constant 0 : index
    %c0_15 = arith.constant 0 : index
    %30 = vector.load %arg3[%c0_13, %c0_14, %c0_15] : memref<1x16x256xf32, #tpu.memory_space<vmem>>, vector<1x16x256xf32>
    %31 = vector.shape_cast %30 : vector<1x16x256xf32> to vector<16x256xf32>
    %32 = vector.shape_cast %29 : vector<16x256xf32> to vector<1x16x256xf32>
    tpu.vector_store %arg3[%c0_13, %c0_14, %c0_15], %32 {strides = array<i32>} : memref<1x16x256xf32, #tpu.memory_space<vmem>>, vector<1x16x256xf32>,
    return
  }
  func.func @transform_0(%arg0: i32) -> (i32, i32, i32) {
    %c0_i32 = arith.constant 0 : i32
    %c0_i32_0 = arith.constant 0 : i32
    %c0_i32_1 = arith.constant 0 : i32
    return %arg0, %c0_i32, %c0_i32_0 : i32, i32, i32
  }
  func.func @transform_1(%arg0: i32) -> i32 {
    %c0_i32 = arith.constant 0 : i32
    %c0_i32_0 = arith.constant 0 : i32
    return %c0_i32 : i32
  }
  func.func @transform_2(%arg0: i32) -> (i32, i32, i32) {
    %c0_i32 = arith.constant 0 : i32
    %c0_i32_0 = arith.constant 0 : i32
    %c0_i32_1 = arith.constant 0 : i32
    return %arg0, %c0_i32, %c0_i32_0 : i32, i32, i32
  }
}

</mosaic_0001>

<llo_original>
// kernel: tpu_custom_call.1
$region0: #{tpu_custom_call.1}
  #allocation0 [shape = 'u32[]', space=smem, size = 0x4, offset = 0x4, fixed_abs, tag = 'smem constant byte address 0x4 - core index']
  #allocation1 [shape = 'u32[144,128]{1,0:T(1,128)}', space=vmem, size = 0x12000, scoped, tag = 'internal scratch']
  #allocation2 [shape = 'f32[32,1]{1,0:T(8,128)}', space=vmem, size = 0x4000, scoped, tag = 'scratch operand']
  %s0 = inlined_call_operand.hbm [shape: f32[2,16,256], index: 0, kind: input, shape index: {}]
  %s1 = inlined_call_operand.vmem [shape: f32[3], index: 1, kind: input, shape index: {}]
  %s2 = inlined_call_operand.hbm [shape: f32[2,16,256], index: 2, kind: output, shape index: {}]
  %s3 = sld [smem:[#allocation0]]
  $region49: #{tpu_custom_call.1} parent=0
    _
  %s5 = ssub.s32 1, %s3
  %s6 = scalar_select 0, %s5, %s3
  $region1: #{tpu_custom_call.1} parent=0
    #allocation3 [shape = 'u8[32768]{0}', space=vmem, size = 0x8000, scoped, tag = 'input window, operand 0']
    #allocation4 [shape = 's32[2]{0}', space=sflag, size = 0x8, scoped, tag = 'scoped memory for tpu_custom_call.1']
    #allocation5 [shape = 's32[2]{0}', space=sflag, size = 0x8, scoped, tag = 'scoped memory for tpu_custom_call.1']
    #allocation6 [shape = 's32[2]{0}', space=sflag, size = 0x8, scoped, tag = 'scoped memory for tpu_custom_call.1']
    #allocation7 [shape = 'u8[512]{0}', space=smem, size = 0x200, scoped, tag = 'input window, operand 1, single buffered']
    #allocation8 [shape = 'u8[32768]{0}', space=vmem, size = 0x8000, scoped, tag = 'output window, operand 0']
    %7 = vsyncpa [#allocation4], 0
    %s8 = scalar_lea.sflag [#allocation4], 1
    %9 = vsyncpa %s8, 0
    %10 = vsyncpa [#allocation6], 0
    %11 = vsyncpa [#allocation5], 0
    %s12 = scalar_lea.sflag [#allocation5], 1
    %13 = vsyncpa %s12, 0
    loop: start=0, step=1, limit=4
    $region2: #{tpu_custom_call.1} parent=1 // loop_pre_header
      _
    $region3: #{tpu_custom_call.1} parent=1 // loop_header
      %s15 = sphi 0, %s19
      %p16 = scmp.ge.s32.totalorder %s15, 4
      %s25 = sphi 0, %s27
      %s28 = sphi 0, %s25
      %s29 = sphi 0, %s28
      %s45 = sphi 0, %s29
      %s49 = sphi 0, %s49
      %s51 = sphi 0, %s49
      %s52 = sphi 0, %s51
      %s66 = sphi 0, %s52
      %s72 = sphi 0, %s74
      %s75 = sphi 0, %s72
      %s76 = sphi 0, %s75
      %s92 = sphi 0, %s76
    $region4: #{tpu_custom_call.1} parent=1 // loop_header_branch
      %18 = sbr.rel (%p16) target = $region8
    $region5: #{tpu_custom_call.1} parent=1 // loop_body
      %s20 = ssub.s32 %s15, 1
      %s21 = ssub.s32 %s15, 2
      %s22 = sadd.s32 %s15, 1
      %s23 = ssub.s32 %s15, %s22
      %p24 = scmp.eq.s32.totalorder %s23, 0
      %s26 = sadd.s32 %s25, 1
      %s27 = scalar_select %p24, %s25, %s26
      %p30 = pneg %p24
      %p31 = scmp.eq.s32.totalorder %s15, 1
      %p32 = por %p30, %p31
      %p33 = scmp.ne.s32.totalorder %s25, %s28
      %p34 = scmp.eq.s32.totalorder %s15, 0
      %p35 = por %p33, %p34
      %p36 = scmp.ne.s32.totalorder %s25, %s28
      %p37 = scmp.eq.s32.totalorder %s20, 1
      %p38 = por %p36, %p37
      %p39 = scmp.ne.s32.totalorder %s28, %s29
      %p40 = scmp.eq.s32.totalorder %s20, 0
      %p41 = por %p39, %p40
      %p42 = scmp.ne.s32.totalorder %s28, %s29
      %p43 = scmp.eq.s32.totalorder %s21, 1
      %p44 = por %p42, %p43
      %p46 = scmp.ne.s32.totalorder %s29, %s45
      %p47 = scmp.eq.s32.totalorder %s21, 0
      %p48 = por %p46, %p47
      %s50 = sadd.s32 %s49, 1
      %p53 = scmp.eq.s32.totalorder %s15, 1
      %p54 = scmp.ne.s32.totalorder %s49, %s51
      %p55 = scmp.eq.s32.totalorder %s15, 0
      %p56 = por %p54, %p55
      %p57 = scmp.ne.s32.totalorder %s49, %s51
      %p58 = scmp.eq.s32.totalorder %s20, 1
      %p59 = por %p57, %p58
      %p60 = scmp.ne.s32.totalorder %s51, %s52
      %p61 = scmp.eq.s32.totalorder %s20, 0
      %p62 = por %p60, %p61
      %p63 = scmp.ne.s32.totalorder %s51, %s52
      %p64 = scmp.eq.s32.totalorder %s21, 1
      %p65 = por %p63, %p64
      %p67 = scmp.ne.s32.totalorder %s52, %s66
      %p68 = scmp.eq.s32.totalorder %s21, 0
      %p69 = por %p67, %p68
      %s70 = ssub.s32 %s15, %s22
      %p71 = scmp.eq.s32.totalorder %s70, 0
      %s73 = sadd.s32 %s72, 1
      %s74 = scalar_select %p71, %s72, %s73
      %p77 = pneg %p71
      %p78 = scmp.eq.s32.totalorder %s15, 1
      %p79 = por %p77, %p78
      %p80 = scmp.ne.s32.totalorder %s72, %s75
      %p81 = scmp.eq.s32.totalorder %s15, 0
      %p82 = por %p80, %p81
      %p83 = scmp.ne.s32.totalorder %s72, %s75
      %p84 = scmp.eq.s32.totalorder %s20, 1
      %p85 = por %p83, %p84
      %p86 = scmp.ne.s32.totalorder %s75, %s76
      %p87 = scmp.eq.s32.totalorder %s20, 0
      %p88 = por %p86, %p87
      %p89 = scmp.ne.s32.totalorder %s75, %s76
      %p90 = scmp.eq.s32.totalorder %s21, 1
      %p91 = por %p89, %p90
      %p93 = scmp.ne.s32.totalorder %s76, %s92
      %p94 = scmp.eq.s32.totalorder %s21, 0
      %p95 = por %p93, %p94
      %p96 = scmp.le.s32.totalorder 1, %s15
      %p97 = scmp.lt.s32.totalorder %s15, 3
      %p98 = pnand %p96, %p97
      %p99 = pneg %p98
      // Predicated region
      $region9: #{tpu_custom_call.1} parent=5 // pred_check
        _
      $region10: #{tpu_custom_call.1} parent=5 // pred_check_branch
        %101 = sbr.rel (%p98) target = $region12
      $region11: #{tpu_custom_call.1} parent=5 // pred_region
        %s102 = ssub.s32 %s15, 1
        // Predicated region
        $region13: #{tpu_custom_call.1} parent=11 // pred_check
          %p103 = pneg %p62
        $region14: #{tpu_custom_call.1} parent=11 // pred_check_branch
          %105 = sbr.rel (%p103) target = $region16
        $region15: #{tpu_custom_call.1} parent=11 // pred_region
          %s107 = ssub.s32 16, 16
          %108 = vsyncadd [#allocation6], %s107
          %s110 = sshll.u32 %s1, 4
          %s111 = int_to_ptr.vmem [resolvable:$true] %s110
          %113 = dma.vmem_to_smem %s111, 16, [#allocation7], [#allocation6]
        $region16: #{tpu_custom_call.1} parent=11 // pred_fallthru
          _
      $region12: #{tpu_custom_call.1} parent=5 // pred_fallthru
        _
      %p114 = scmp.lt.s32.totalorder %s15, 2
      // Predicated region
      $region17: #{tpu_custom_call.1} parent=5 // pred_check
        %p115 = pneg %p114
      $region18: #{tpu_custom_call.1} parent=5 // pred_check_branch
        %117 = sbr.rel (%p115) target = $region20
      $region19: #{tpu_custom_call.1} parent=5 // pred_region
        // Predicated region
        $region21: #{tpu_custom_call.1} parent=19 // pred_check
          %p118 = pneg %p35
        $region22: #{tpu_custom_call.1} parent=19 // pred_check_branch
          %120 = sbr.rel (%p118) target = $region24
        $region23: #{tpu_custom_call.1} parent=19 // pred_region
          %s121 = sand.u32 %s25, 1
          %s122 = scalar_lea.sflag [#allocation4], %s121
          %s123 = sand.u32 %s25, 1
          %s124 = smul.addr %s123, 32
          %s125 = scalar_lea.vmem [#allocation3], %s124
          %s127 = ssub.s32 512, 512
          %128 = vsyncadd %s122, %s127
          %s129 = smul.addr %s15, 4
          %s130 = smul.addr %s129, 128
          %s131 = scalar_lea.hbm %s0, %s130
          %s132 = sshll.u32 %s125, 4
          %s133 = int_to_ptr.vmem [resolvable:$true] %s132
          %138 = dma.hbm_to_vmem [thread:$0]  %s131, 512, %s133, %s122, 256, 256, 16
        $region24: #{tpu_custom_call.1} parent=19 // pred_fallthru
          _
      $region20: #{tpu_custom_call.1} parent=5 // pred_fallthru
        _
      %p139 = scmp.le.s32.totalorder 1, %s15
      %p140 = scmp.lt.s32.totalorder %s15, 3
      %p141 = pnand %p139, %p140
      %p142 = pneg %p141
      // Predicated region
      $region25: #{tpu_custom_call.1} parent=5 // pred_check
        _
      $region26: #{tpu_custom_call.1} parent=5 // pred_check_branch
        %144 = sbr.rel (%p141) target = $region28
      $region27: #{tpu_custom_call.1} parent=5 // pred_region
        %s145 = ssub.s32 %s15, 1
        %s146 = sand.u32 %s28, 1
        %s147 = scalar_lea.sflag [#allocation4], %s146
        %s148 = sand.u32 %s28, 1
        %s149 = smul.addr %s148, 32
        %s150 = scalar_lea.vmem [#allocation3], %s149
        // Predicated region
        $region29: #{tpu_custom_call.1} parent=27 // pred_check
          %p151 = pneg %p41
        $region30: #{tpu_custom_call.1} parent=27 // pred_check_branch
          %153 = sbr.rel (%p151) target = $region32
        $region31: #{tpu_custom_call.1} parent=27 // pred_region
          %154 = dma.done %s147, 512
        $region32: #{tpu_custom_call.1} parent=27 // pred_fallthru
          _
        // Predicated region
        $region33: #{tpu_custom_call.1} parent=27 // pred_check
          %p155 = pneg %p62
        $region34: #{tpu_custom_call.1} parent=27 // pred_check_branch
          %157 = sbr.rel (%p155) target = $region36
        $region35: #{tpu_custom_call.1} parent=27 // pred_region
          %158 = dma.done [#allocation6], 16
        $region36: #{tpu_custom_call.1} parent=27 // pred_fallthru
          _
        %159 = sfence
        %s160 = sand.u32 %s28, 1
        %s161 = scalar_lea.sflag [#allocation4], %s160
        %s162 = sand.u32 %s28, 1
        %s163 = smul.addr %s162, 32
        %s164 = scalar_lea.vmem [#allocation3], %s163
        %p165 = pneg %p41
        %p166 = pneg %p38
        %p167 = pneg %p62
        %p168 = pneg %p59
        %p169 = pneg %p88
        %p170 = pneg %p85
        %s171 = sand.u32 %s75, 1
        %s172 = scalar_lea.sflag [#allocation5], %s171
        %s173 = sand.u32 %s75, 1
        %s174 = smul.addr %s173, 32
        %s175 = scalar_lea.vmem [#allocation8], %s174
        %v176 = vld [vmem:[%s150] sm:$0xff]
        %v177 = vld [vmem:[%s150 + $0x8] sm:$0xff]
        %v178 = vld [vmem:[%s150 + $0x10] sm:$0xff]
        %v179 = vld [vmem:[%s150 + $0x18] sm:$0xff]
        %v180 = vadd.f32 %v176, %v177
        %181 = vadd.xlane.f32.xlu0 %v180
        %v182 = vpop.xlane.xlu0 %181
        %v183 = vadd.f32 %v178, %v179
        %184 = vadd.xlane.f32.xlu0 %v183
        %v185 = vpop.xlane.xlu0 %184
        %v186 = vrcp.pop 256.0
        %v187 = vmul.f32 %v182, %v186
        %v188 = vmul.f32 %v185, %v186
        %vm189 = vcmask 7168
        %190 = vst.msk [vmem:[#allocation2] sm:$0xff] %vm189, 0.0
        %191 = vst.msk [vmem:[#allocation2 + $0x8] sm:$0xff] %vm189, 0.0
        %192 = vst.msk [vmem:[#allocation2 + $0x10] sm:$0xff] %vm189, 0.0
        %193 = vst.msk [vmem:[#allocation2 + $0x18] sm:$0xff] %vm189, 0.0
        %194 = vst.msk [vmem:[#allocation2 + $0x8] sm:$0xff] %vm189, %v187
        %195 = vst.msk [vmem:[#allocation2 + $0x10] sm:$0xff] %vm189, %v188
        %s196 = sld [smem:[#allocation7]]
        %v197 = vld [vmem:[#allocation2 + $0x7] sm:$0xff]
        %v198 = vld [vmem:[#allocation2 + $0xf] sm:$0xff]
        %v199 = vstv %s196
        %v200 = vmul.f32 %v199, %v197
        %v201 = vmul.f32 %v199, %v198
        %s202 = sld [smem:[#allocation7 + $0x1]]
        %v203 = vld [vmem:[#allocation2 + $0x8] sm:$0xff]
        %v204 = vld [vmem:[#allocation2 + $0x10] sm:$0xff]
        %v205 = vstv %s202
        %v206 = vmul.f32 %v205, %v203
        %v207 = vmul.f32 %v205, %v204
        %v208 = vadd.f32 %v200, %v206
        %v209 = vadd.f32 %v201, %v207
        %s210 = sld [smem:[#allocation7 + $0x2]]
        %v211 = vld [vmem:[#allocation2 + $0x9] sm:$0xff]
        %v212 = vld [vmem:[#allocation2 + $0x11] sm:$0xff]
        %v213 = vstv %s210
        %v214 = vmul.f32 %v213, %v211
        %v215 = vmul.f32 %v213, %v212
        %v216 = vadd.f32 %v208, %v214
        %v217 = vadd.f32 %v209, %v215
        %v218 = vxor.u32 %v216, 2147483648
        %v219 = vxor.u32 %v217, 2147483648
        %v220 = vmul.f32 %v218, 1.442695
        %v221 = vpow.pop %v220
        %v222 = vmul.f32 %v219, 1.442695
        %v223 = vpow.pop %v222
        %v224 = vadd.f32 %v221, 1.0
        %v225 = vadd.f32 %v223, 1.0
        %v226 = vrcp.pop %v224
        %v227 = vmul.f32 1.0, %v226
        %v228 = vrcp.pop %v225
        %v229 = vmul.f32 1.0, %v228
        %231 = vset.pattern.permute.xlu0 0
        %232 = vperm.xlu0 %231, %v227
        %v233 = vpop.permute.xlu0 %232
        %236 = vset.pattern.permute.xlu0 0
        %237 = vperm.xlu0 %236, %v229
        %v238 = vpop.permute.xlu0 %237
        %v240 = vmul.f32 %v176, %v233
        %v241 = vmul.f32 %v177, %v233
        %v242 = vmul.f32 %v178, %v238
        %v243 = vmul.f32 %v179, %v238
        %244 = vst [vmem:[%s175] sm:$0xff] %v240
        %245 = vst [vmem:[%s175 + $0x8] sm:$0xff] %v241
        %246 = vst [vmem:[%s175 + $0x10] sm:$0xff] %v242
        %247 = vst [vmem:[%s175 + $0x18] sm:$0xff] %v243
        %s248 = sand.u32 %s75, 1
        %s249 = scalar_lea.sflag [#allocation5], %s248
        %s250 = sand.u32 %s75, 1
        %s251 = smul.addr %s250, 32
        %s252 = scalar_lea.vmem [#allocation8], %s251
        // Predicated region
        $region37: #{tpu_custom_call.1} parent=27 // pred_check
          %p253 = pneg %p85
        $region38: #{tpu_custom_call.1} parent=27 // pred_check_branch
          %255 = sbr.rel (%p253) target = $region40
        $region39: #{tpu_custom_call.1} parent=27 // pred_region
          %s257 = ssub.s32 512, 512
          %258 = vsyncadd %s249, %s257
          %s259 = smul.addr %s20, 4
          %s260 = smul.addr %s259, 128
          %s261 = scalar_lea.hbm %s2, %s260
          %s262 = sshll.u32 %s252, 4
          %s263 = int_to_ptr.vmem [resolvable:$true] %s262
          %268 = dma.vmem_to_hbm [thread:$0]  %s263, 512, %s261, %s249, 256, 256, 16
        $region40: #{tpu_custom_call.1} parent=27 // pred_fallthru
          _
      $region28: #{tpu_custom_call.1} parent=5 // pred_fallthru
        _
      %p269 = scmp.le.s32.totalorder 2, %s15
      // Predicated region
      $region41: #{tpu_custom_call.1} parent=5 // pred_check
        %p270 = pneg %p269
      $region42: #{tpu_custom_call.1} parent=5 // pred_check_branch
        %272 = sbr.rel (%p270) target = $region44
      $region43: #{tpu_custom_call.1} parent=5 // pred_region
        %s273 = ssub.s32 %s15, 2
        // Predicated region
        $region45: #{tpu_custom_call.1} parent=43 // pred_check
          %p274 = pneg %p91
        $region46: #{tpu_custom_call.1} parent=43 // pred_check_branch
          %276 = sbr.rel (%p274) target = $region48
        $region47: #{tpu_custom_call.1} parent=43 // pred_region
          %s277 = sand.u32 %s76, 1
          %s278 = scalar_lea.sflag [#allocation5], %s277
          %s279 = sand.u32 %s76, 1
          %s280 = smul.addr %s279, 32
          %s281 = scalar_lea.vmem [#allocation8], %s280
          %282 = dma.done %s278, 512
        $region48: #{tpu_custom_call.1} parent=43 // pred_fallthru
          _
      $region44: #{tpu_custom_call.1} parent=5 // pred_fallthru
        _
    $region6: #{tpu_custom_call.1} parent=1 // loop_footer
      %s19 = sadd.s32 1, %s15
    $region7: #{tpu_custom_call.1} parent=1 // loop_footer_branch
      %14 = sbr.rel target = $region3
    $region8: #{tpu_custom_call.1} parent=1 // loop_exit
      _
    %283 = vsyncpa [#allocation4], 1
    %s284 = scalar_lea.sflag [#allocation4], 1
    %285 = vsyncpa %s284, 1
    %286 = vsyncpa [#allocation5], 1
    %s287 = scalar_lea.sflag [#allocation5], 1
    %288 = vsyncpa %s287, 1
    %289 = vsyncpa [#allocation6], 1
    %s290 = scalar_lea.sflag [#allocation6], 1
    %291 = vsyncpa %s290, 1

</llo_original>
